<compile_context>
chip_gen: v6e
topology: v6e:2x2x1
jax: 0.10.0
libtpu: 0.0.40
codegen_flags: <defaults>
</compile_context>

<pallas_src>
import functools

import jax
import jax.numpy as jnp
from jax.experimental import pallas as pl
from jax.experimental.pallas import tpu as pltpu

C_PAD = 128  # lane-dense class dimension (one full vreg lane width)


def gcn_kernel(x_ref, adj_ref, w1_ref, b1_ref, w2_ref, wr_ref, bias_ref,
               out_ref, *, nclass):
    # f32 graph inputs, cast to bf16 in-kernel (single HBM->VMEM pass).
    x = x_ref[...].astype(jnp.bfloat16)      # (N, F)
    adj = adj_ref[...].astype(jnp.bfloat16)  # (N, N)
    w1 = w1_ref[...]                         # (F, H)      bf16
    b1 = b1_ref[...]                         # (1, H)      f32
    w2 = w2_ref[...]                         # (H, C_PAD)  bf16 (zero-padded classes)
    wr = wr_ref[...]                         # (F, C_PAD)  bf16 (pre-transposed, padded)
    bias = bias_ref[...]                     # (1, C_PAD)  f32  (= b2 + br, padded)

    # residual = Linear(x) = x @ Wr^T (bias folded into `bias`)     (N, C_PAD)
    residual = jnp.dot(x, wr, preferred_element_type=jnp.float32)

    # gc1 (re-associated): relu((adj @ x) @ W1 + b1)
    ax = jnp.dot(adj, x, preferred_element_type=jnp.float32)        # (N, F) dominant matmul
    h1 = jnp.dot(ax.astype(jnp.bfloat16), w1,
                 preferred_element_type=jnp.float32) + b1           # (N, H)
    h1 = jnp.maximum(h1, 0.0)

    # F.dropout at inference time (training=False) is identity.
    # TODO(synk): training-mode dropout (pltpu.prng_*) not implemented.

    # gc2: relu(adj @ (h1 @ W2) + b2 + residual)   (C < H => this ordering is cheaper)
    support2 = jnp.dot(h1.astype(jnp.bfloat16), w2,
                       preferred_element_type=jnp.float32)           # (N, C_PAD)
    z = jnp.dot(adj, support2.astype(jnp.bfloat16),
                preferred_element_type=jnp.float32)                  # (N, C_PAD)
    z = z + bias + residual
    z = jnp.maximum(z, 0.0)

    # Mask the padded class lanes, then numerically-stable log_softmax over dim 1.
    col = jax.lax.broadcasted_iota(jnp.int32, z.shape, dimension=1)
    z = jnp.where(col < nclass, z, jnp.float32(-1e30))
    zmax = jnp.max(z, axis=1, keepdims=True)
    zs = z - zmax
    lse = jnp.log(jnp.sum(jnp.exp(zs), axis=1, keepdims=True))
    out_ref[...] = zs - lse                                          # full 128-lane store


def prepare_gcn_params(w1, b1, w2, b2, wr_t, br):
    """One-time parameter prep (do NOT call per forward).

    Casts weights to bf16, zero-pads the class dimension to C_PAD lanes,
    pre-transposes the nn.Linear weight (given as (nclass, nfeat)), and folds
    the gc2 bias and residual-Linear bias into a single f32 bias.
    """
    nclass = w2.shape[1]
    pad = C_PAD - nclass
    w1_bf = w1.astype(jnp.bfloat16)
    w2_p = jnp.pad(w2, ((0, 0), (0, pad))).astype(jnp.bfloat16)
    wr_p = jnp.pad(wr_t.T, ((0, 0), (0, pad))).astype(jnp.bfloat16)
    bias_p = jnp.pad(b2 + br, ((0, 0), (0, pad)))                    # f32 (1, C_PAD)
    return dict(w1=w1_bf, b1=b1, w2=w2_p, wr=wr_p, bias=bias_p), nclass


@functools.partial(jax.jit, static_argnames=("nclass",))
def gcn_forward(x, adj, w1_bf, b1, w2_p, wr_p, bias_p, *, nclass):
    N, F = x.shape
    H = w1_bf.shape[1]

    flops = (2 * N * N * F            # adj @ x
             + 2 * N * F * H          # ax @ w1
             + 2 * N * H * C_PAD      # h1 @ w2
             + 2 * N * N * C_PAD      # adj @ support2
             + 2 * N * F * C_PAD)     # x @ wr (residual)
    bytes_accessed = (4 * N * N + 4 * N * F                         # adj, x (f32 in)
                      + 2 * (F * H + H * C_PAD + F * C_PAD)         # bf16 weights
                      + 4 * (H + 2 * C_PAD)                         # biases
                      + 4 * N * C_PAD)                              # f32 out slab
    cost = pl.CostEstimate(flops=flops,
                           transcendentals=2 * N * C_PAD,           # exp + log
                           bytes_accessed=bytes_accessed)

    vmem = pl.BlockSpec(memory_space=pltpu.MemorySpace.VMEM)
    out_padded = pl.pallas_call(
        functools.partial(gcn_kernel, nclass=nclass),
        out_shape=jax.ShapeDtypeStruct((N, C_PAD), jnp.float32),
        in_specs=[vmem] * 7,
        out_specs=vmem,
        cost_estimate=cost,
    )(x, adj, w1_bf, b1, w2_p, wr_p, bias_p)
    return out_padded[:, :nclass]


if __name__ == "__main__":
    # Small shapes consistent with the module's forward.
    N, nfeat, nhid, nclass = 64, 16, 32, 8

    key = jax.random.PRNGKey(0)
    kx, kadj, k1, k1b, k2, k2b, kr, krb = jax.random.split(key, 8)

    x = jax.random.normal(kx, (N, nfeat), dtype=jnp.float32)

    # Symmetric, row-normalized dense adjacency (as a GCN would use).
    a = jax.random.uniform(kadj, (N, N), dtype=jnp.float32)
    a = (a + a.T) * 0.5 + jnp.eye(N, dtype=jnp.float32)
    adj = a / jnp.sum(a, axis=1, keepdims=True)

    # GraphConvolution init: uniform(-stdv, stdv), stdv = 1/sqrt(out_features)
    stdv1 = 1.0 / (nhid ** 0.5)
    w1 = jax.random.uniform(k1, (nfeat, nhid), jnp.float32, -stdv1, stdv1)
    b1 = jax.random.uniform(k1b, (1, nhid), jnp.float32, -stdv1, stdv1)

    stdv2 = 1.0 / (nclass ** 0.5)
    w2 = jax.random.uniform(k2, (nhid, nclass), jnp.float32, -stdv2, stdv2)
    b2 = jax.random.uniform(k2b, (1, nclass), jnp.float32, -stdv2, stdv2)

    # nn.Linear(nfeat, nclass): weight (nclass, nfeat), bias (nclass,)
    bound = 1.0 / (nfeat ** 0.5)
    wr_t = jax.random.uniform(kr, (nclass, nfeat), jnp.float32, -bound, bound)
    br = jax.random.uniform(krb, (1, nclass), jnp.float32, -bound, bound)

    # One-time param prep (bf16 casts, padding, bias fold) -- not per forward.
    params, nclass_ = prepare_gcn_params(w1, b1, w2, b2, wr_t, br)
    params = jax.tree_util.tree_map(jax.block_until_ready, params)

    out = gcn_forward(x, adj, params["w1"], params["b1"], params["w2"],
                      params["wr"], params["bias"], nclass=nclass_)
    jax.block_until_ready(out)
    assert out.shape == (N, nclass)
    assert bool(jnp.all(jnp.isfinite(out)))

    # Reference 1: mirrors the kernel's precision choices (bf16 MXU inputs,
    # f32 accumulation, re-associated gc1) -> tight-ish tolerance.
    wr = wr_t.T
    xb, adjb = x.astype(jnp.bfloat16), adj.astype(jnp.bfloat16)
    w1b, w2b, wrb = (w1.astype(jnp.bfloat16), w2.astype(jnp.bfloat16),
                     wr.astype(jnp.bfloat16))
    res_b = jnp.dot(xb, wrb, preferred_element_type=jnp.float32) + br
    ax_b = jnp.dot(adjb, xb, preferred_element_type=jnp.float32)
    h1_b = jnp.maximum(
        jnp.dot(ax_b.astype(jnp.bfloat16), w1b,
                preferred_element_type=jnp.float32) + b1, 0.0)
    s2_b = jnp.dot(h1_b.astype(jnp.bfloat16), w2b,
                   preferred_element_type=jnp.float32)
    z_b = jnp.maximum(
        jnp.dot(adjb, s2_b.astype(jnp.bfloat16),
                preferred_element_type=jnp.float32) + b2 + res_b, 0.0)
    ref_bf = jax.nn.log_softmax(z_b, axis=1)
    assert jnp.allclose(out, ref_bf, atol=1e-2, rtol=1e-2), "mismatch vs bf16 reference"

    # Reference 2: original module semantics in full f32 (looser tolerance
    # because of the bf16 MXU inputs and the gc1 re-association).
    res_f = x @ wr + br
    h1_f = jnp.maximum(adj @ (x @ w1) + b1, 0.0)
    z_f = jnp.maximum(adj @ (h1_f @ w2) + b2 + res_f, 0.0)
    ref_f32 = jax.nn.log_softmax(z_f, axis=1)
    assert jnp.allclose(out, ref_f32, atol=1e-1, rtol=1e-1), "mismatch vs f32 reference"

    print("KERNEL_OK")
</pallas_src>

<mosaic_0001>
module attributes {stable_mosaic.version = 11 : i64} {
  func.func @gcn_kernel(%arg0: memref<64x16xf32, #tpu.memory_space<vmem>>, %arg1: memref<64x64xf32, #tpu.memory_space<vmem>>, %arg2: memref<16x32xbf16, #tpu.memory_space<vmem>>, %arg3: memref<1x32xf32, #tpu.memory_space<vmem>>, %arg4: memref<32x128xbf16, #tpu.memory_space<vmem>>, %arg5: memref<16x128xbf16, #tpu.memory_space<vmem>>, %arg6: memref<1x128xf32, #tpu.memory_space<vmem>>, %arg7: memref<64x128xf32, #tpu.memory_space<vmem>>) attributes {dimension_semantics = [], scalar_prefetch = 0 : i64, scratch_operands = 0 : i64, tpu.core_type = #tpu.core_type<tc>} {
    %c0 = arith.constant 0 : index
    %c0_0 = arith.constant 0 : index
    %0 = vector.load %arg0[%c0, %c0_0] : memref<64x16xf32, #tpu.memory_space<vmem>>, vector<64x16xf32>
    %1 = arith.truncf %0 : vector<64x16xf32> to vector<64x16xbf16>
    %c0_1 = arith.constant 0 : index
    %c0_2 = arith.constant 0 : index
    %2 = vector.load %arg1[%c0_1, %c0_2] : memref<64x64xf32, #tpu.memory_space<vmem>>, vector<64x64xf32>
    %3 = arith.truncf %2 : vector<64x64xf32> to vector<64x64xbf16>
    %c0_3 = arith.constant 0 : index
    %c0_4 = arith.constant 0 : index
    %4 = vector.load %arg2[%c0_3, %c0_4] : memref<16x32xbf16, #tpu.memory_space<vmem>>, vector<16x32xbf16>
    %c0_5 = arith.constant 0 : index
    %c0_6 = arith.constant 0 : index
    %5 = vector.load %arg3[%c0_5, %c0_6] : memref<1x32xf32, #tpu.memory_space<vmem>>, vector<1x32xf32>
    %c0_7 = arith.constant 0 : index
    %c0_8 = arith.constant 0 : index
    %6 = vector.load %arg4[%c0_7, %c0_8] : memref<32x128xbf16, #tpu.memory_space<vmem>>, vector<32x128xbf16>
    %c0_9 = arith.constant 0 : index
    %c0_10 = arith.constant 0 : index
    %7 = vector.load %arg5[%c0_9, %c0_10] : memref<16x128xbf16, #tpu.memory_space<vmem>>, vector<16x128xbf16>
    %c0_11 = arith.constant 0 : index
    %c0_12 = arith.constant 0 : index
    %8 = vector.load %arg6[%c0_11, %c0_12] : memref<1x128xf32, #tpu.memory_space<vmem>>, vector<1x128xf32>
    %cst = arith.constant dense<0.000000e+00> : vector<64x128xf32>
    %9 = tpu.matmul %1, %7, %cst {dimension_numbers = #tpu.dot_dimension_numbers<[1], [0], [0], [1], [0, 0, 1, 1], [], []>} : vector<64x16xbf16>, vector<16x128xbf16>, vector<64x128xf32> -> vector<64x128xf32>
    %cst_13 = arith.constant dense<0.000000e+00> : vector<64x16xf32>
    %10 = tpu.matmul %3, %1, %cst_13 {dimension_numbers = #tpu.dot_dimension_numbers<[1], [0], [0], [1], [0, 0, 1, 1], [], []>} : vector<64x64xbf16>, vector<64x16xbf16>, vector<64x16xf32> -> vector<64x16xf32>
    %11 = arith.truncf %10 : vector<64x16xf32> to vector<64x16xbf16>
    %cst_14 = arith.constant dense<0.000000e+00> : vector<64x32xf32>
    %12 = tpu.matmul %11, %4, %cst_14 {dimension_numbers = #tpu.dot_dimension_numbers<[1], [0], [0], [1], [0, 0, 1, 1], [], []>} : vector<64x16xbf16>, vector<16x32xbf16>, vector<64x32xf32> -> vector<64x32xf32>
    %13 = vector.broadcast %5 : vector<1x32xf32> to vector<64x32xf32>
    %14 = arith.addf %12, %13 : vector<64x32xf32>
    %cst_15 = arith.constant 0.000000e+00 : f32
    %15 = vector.broadcast %cst_15 : f32 to vector<64x32xf32>
    %16 = arith.maximumf %14, %15 : vector<64x32xf32>
    %17 = arith.truncf %16 : vector<64x32xf32> to vector<64x32xbf16>
    %cst_16 = arith.constant dense<0.000000e+00> : vector<64x128xf32>
    %18 = tpu.matmul %17, %6, %cst_16 {dimension_numbers = #tpu.dot_dimension_numbers<[1], [0], [0], [1], [0, 0, 1, 1], [], []>} : vector<64x32xbf16>, vector<32x128xbf16>, vector<64x128xf32> -> vector<64x128xf32>
    %19 = arith.truncf %18 : vector<64x128xf32> to vector<64x128xbf16>
    %cst_17 = arith.constant dense<0.000000e+00> : vector<64x128xf32>
    %20 = tpu.matmul %3, %19, %cst_17 {dimension_numbers = #tpu.dot_dimension_numbers<[1], [0], [0], [1], [0, 0, 1, 1], [], []>} : vector<64x64xbf16>, vector<64x128xbf16>, vector<64x128xf32> -> vector<64x128xf32>
    %21 = vector.broadcast %8 : vector<1x128xf32> to vector<64x128xf32>
    %22 = arith.addf %20, %21 : vector<64x128xf32>
    %23 = arith.addf %22, %9 : vector<64x128xf32>
    %cst_18 = arith.constant 0.000000e+00 : f32
    %24 = vector.broadcast %cst_18 : f32 to vector<64x128xf32>
    %25 = arith.maximumf %23, %24 : vector<64x128xf32>
    %26 = tpu.iota {dimensions = array<i32: 1>} : vector<64x128xi32>
    %c8_i32 = arith.constant 8 : i32
    %27 = vector.broadcast %c8_i32 : i32 to vector<64x128xi32>
    %28 = arith.cmpi slt, %26, %27 : vector<64x128xi32>
    %cst_19 = arith.constant -1.000000e+30 : f32
    %29 = vector.broadcast %cst_19 : f32 to vector<64x128xf32>
    %30 = arith.select %28, %25, %29 : vector<64x128xi1>, vector<64x128xf32>
    %cst_20 = arith.constant dense<0xFF800000> : vector<64xf32>
    %31 = vector.multi_reduction <maximumf>, %30, %cst_20 [1] : vector<64x128xf32> to vector<64xf32>
    %32 = vector.shape_cast %31 : vector<64xf32> to vector<64x1xf32>
    %33 = vector.broadcast %32 : vector<64x1xf32> to vector<64x128xf32>
    %34 = arith.subf %30, %33 : vector<64x128xf32>
    %35 = math.exp %34 : vector<64x128xf32>
    %cst_21 = arith.constant dense<0.000000e+00> : vector<64xf32>
    %36 = vector.multi_reduction <add>, %35, %cst_21 [1] : vector<64x128xf32> to vector<64xf32>
    %37 = vector.shape_cast %36 : vector<64xf32> to vector<64x1xf32>
    %38 = math.log %37 : vector<64x1xf32>
    %39 = vector.broadcast %38 : vector<64x1xf32> to vector<64x128xf32>
    %40 = arith.subf %34, %39 : vector<64x128xf32>
    %c0_22 = arith.constant 0 : index
    %c0_23 = arith.constant 0 : index
    %41 = vector.load %arg7[%c0_22, %c0_23] : memref<64x128xf32, #tpu.memory_space<vmem>>, vector<64x128xf32>
    tpu.vector_store %arg7[%c0_22, %c0_23], %40 {strides = array<i32>} : memref<64x128xf32, #tpu.memory_space<vmem>>, vector<64x128xf32>,
    return
  }
}

</mosaic_0001>

<llo_original>
// kernel: gcn_forward.1
$region0: #{gcn_forward.1}
  #allocation0 [shape = 'u32[]', space=smem, size = 0x4, offset = 0x4, fixed_abs, tag = 'smem constant byte address 0x4 - core index']
  #allocation1 [shape = 'u32[144,128]{1,0:T(1,128)}', space=vmem, size = 0x12000, scoped, tag = 'internal scratch']
  %s0 = inlined_call_operand.vmem [shape: f32[64,16], index: 0, kind: input, shape index: {}]
  %s1 = inlined_call_operand.vmem [shape: f32[64,64], index: 1, kind: input, shape index: {}]
  %s2 = inlined_call_operand.hbm [shape: bf16[16,32], index: 2, kind: input, shape index: {}]
  %s3 = inlined_call_operand.vmem [shape: f32[1,32], index: 3, kind: input, shape index: {}]
  %s4 = inlined_call_operand.vmem [shape: bf16[32,128], index: 4, kind: input, shape index: {}]
  %s5 = inlined_call_operand.vmem [shape: bf16[16,128], index: 5, kind: input, shape index: {}]
  %s6 = inlined_call_operand.vmem [shape: f32[1,128], index: 6, kind: input, shape index: {}]
  %s7 = inlined_call_operand.vmem [shape: f32[64,128], index: 7, kind: output, shape index: {}]
  %s8 = sld [smem:[#allocation0]]
  $region42: #{gcn_forward.1} parent=0
    _
  %s10 = ssub.s32 1, %s8
  %s11 = scalar_select 0, %s10, %s8
  $region1: #{gcn_forward.1} parent=0
    #allocation2 [shape = 'u8[4096]{0}', space=vmem, size = 0x1000, scoped, tag = 'input window, operand 2, single buffered']
    #allocation3 [shape = 's32[1]{0}', space=sflag, size = 0x4, scoped, tag = 'scoped memory for gcn_forward.1']
    %12 = vsyncpa [#allocation3], 0
    // Predicated region
    $region2: #{gcn_forward.1} parent=1 // pred_check
      _
    $region3: #{gcn_forward.1} parent=1 // pred_check_branch
      %14 = sbr.rel (0) target = $region5
    $region4: #{gcn_forward.1} parent=1 // pred_region
      _
    $region5: #{gcn_forward.1} parent=1 // pred_fallthru
      _
    // Predicated region
    $region6: #{gcn_forward.1} parent=1 // pred_check
      _
    $region7: #{gcn_forward.1} parent=1 // pred_check_branch
      %16 = sbr.rel (0) target = $region9
    $region8: #{gcn_forward.1} parent=1 // pred_region
      _
    $region9: #{gcn_forward.1} parent=1 // pred_fallthru
      _
    // Predicated region
    $region10: #{gcn_forward.1} parent=1 // pred_check
      _
    $region11: #{gcn_forward.1} parent=1 // pred_check_branch
      %18 = sbr.rel (0) target = $region13
    $region12: #{gcn_forward.1} parent=1 // pred_region
      %s20 = ssub.s32 128, 128
      %21 = vsyncadd [#allocation3], %s20
      %s22 = sshll.u32 [#allocation2], 4
      %s23 = int_to_ptr.vmem [resolvable:$true] %s22
      %28 = dma.hbm_to_vmem [thread:$0]  %s2, 128, %s23, [#allocation3], 64, 64, 4
    $region13: #{gcn_forward.1} parent=1 // pred_fallthru
      _
    // Predicated region
    $region14: #{gcn_forward.1} parent=1 // pred_check
      _
    $region15: #{gcn_forward.1} parent=1 // pred_check_branch
      %30 = sbr.rel (0) target = $region17
    $region16: #{gcn_forward.1} parent=1 // pred_region
      _
    $region17: #{gcn_forward.1} parent=1 // pred_fallthru
      _
    // Predicated region
    $region18: #{gcn_forward.1} parent=1 // pred_check
      _
    $region19: #{gcn_forward.1} parent=1 // pred_check_branch
      %32 = sbr.rel (0) target = $region21
    $region20: #{gcn_forward.1} parent=1 // pred_region
      _
    $region21: #{gcn_forward.1} parent=1 // pred_fallthru
      _
    // Predicated region
    $region22: #{gcn_forward.1} parent=1 // pred_check
      _
    $region23: #{gcn_forward.1} parent=1 // pred_check_branch
      %34 = sbr.rel (0) target = $region25
    $region24: #{gcn_forward.1} parent=1 // pred_region
      _
    $region25: #{gcn_forward.1} parent=1 // pred_fallthru
      _
    // Predicated region
    $region26: #{gcn_forward.1} parent=1 // pred_check
      _
    $region27: #{gcn_forward.1} parent=1 // pred_check_branch
      %36 = sbr.rel (0) target = $region29
    $region28: #{gcn_forward.1} parent=1 // pred_region
      _
    $region29: #{gcn_forward.1} parent=1 // pred_fallthru
      _
    // Predicated region
    $region30: #{gcn_forward.1} parent=1 // pred_check
      _
    $region31: #{gcn_forward.1} parent=1 // pred_check_branch
      %38 = sbr.rel (0) target = $region33
    $region32: #{gcn_forward.1} parent=1 // pred_region
      %39 = dma.done [#allocation3], 128
    $region33: #{gcn_forward.1} parent=1 // pred_fallthru
      _
    %v41 = vld [vmem:[%s0] sm:$0xff]
    %v42 = vld [vmem:[%s0 + $0x8] sm:$0xff]
    %v43 = vld [vmem:[%s0 + $0x10] sm:$0xff]
    %v44 = vld [vmem:[%s0 + $0x18] sm:$0xff]
    %v45 = vld [vmem:[%s0 + $0x20] sm:$0xff]
    %v46 = vld [vmem:[%s0 + $0x28] sm:$0xff]
    %v47 = vld [vmem:[%s0 + $0x30] sm:$0xff]
    %v48 = vld [vmem:[%s0 + $0x38] sm:$0xff]
    %v49 = vpack.c.bf16 %v42, %v41
    %v50 = vpack.c.bf16 %v44, %v43
    %v51 = vpack.c.bf16 %v46, %v45
    %v52 = vpack.c.bf16 %v48, %v47
    %v53 = vld [vmem:[%s1] sm:$0xff]
    %v54 = vld [vmem:[%s1 + $0x8] sm:$0xff]
    %v55 = vld [vmem:[%s1 + $0x10] sm:$0xff]
    %v56 = vld [vmem:[%s1 + $0x18] sm:$0xff]
    %v57 = vld [vmem:[%s1 + $0x20] sm:$0xff]
    %v58 = vld [vmem:[%s1 + $0x28] sm:$0xff]
    %v59 = vld [vmem:[%s1 + $0x30] sm:$0xff]
    %v60 = vld [vmem:[%s1 + $0x38] sm:$0xff]
    %v61 = vpack.c.bf16 %v54, %v53
    %v62 = vpack.c.bf16 %v56, %v55
    %v63 = vpack.c.bf16 %v58, %v57
    %v64 = vpack.c.bf16 %v60, %v59
    %v65 = vld [vmem:[#allocation2] sm:$0xf]
    %v66 = vld [vmem:[#allocation2 + $0x4] sm:$0xf]
    %v67 = vld [vmem:[%s3] sm:$0x1]
    %v68 = vld [vmem:[%s4] sm:$0xf]
    %v69 = vld [vmem:[%s4 + $0x4] sm:$0xf]
    %v70 = vld [vmem:[%s4 + $0x8] sm:$0xf]
    %v71 = vld [vmem:[%s4 + $0xc] sm:$0xf]
    %v72 = vld [vmem:[%s5] sm:$0xf]
    %v73 = vld [vmem:[%s5 + $0x4] sm:$0xf]
    %v74 = vld [vmem:[%s6] sm:$0x1]
    %v77 = vunpack.c.l.b16 %v72
    %v78 = vunpack.c.l.b16 %v73
    %v79 = vpack.c.b16 %v78, %v77
    %vm81 = vcmask 130048
    %v83 = vsel %vm81, %v49, 0
    %v86 = vsel %vm81, %v50, 0
    %v89 = vsel %vm81, %v51, 0
    %v92 = vsel %vm81, %v52, 0
    %94 = vmatprep.subr.bf16.mxu0 0
    %95 = vmatpush1.bf16.msra.mxu0 0
    %96 = vmatprep.subr.bf16.mxu0 0
    %97 = vmatpush1.bf16.msra.mxu0 0
    %98 = vmatprep.subr.bf16.mxu0 0
    %99 = vmatpush1.bf16.msra.mxu0 0
    %100 = vmatprep.subr.bf16.mxu0 0
    %101 = vmatpush1.bf16.msra.mxu0 0
    %102 = vmatprep.subr.bf16.mxu0 0
    %103 = vmatpush1.bf16.msra.mxu0 0
    %104 = vmatprep.subr.bf16.mxu0 0
    %105 = vmatpush1.bf16.msra.mxu0 0
    %106 = vmatprep.subr.bf16.mxu0 0
    %107 = vmatpush1.bf16.msra.mxu0 0
    %108 = vmatprep.subr.bf16.mxu0 0
    %109 = vmatpush1.bf16.msra.mxu0 %v79
    %110 = vmatprep.subr.bf16.mxu0 0
    %111 = vmatpush2.bf16.msra.mxu0 0
    %112 = vmatprep.subr.bf16.mxu0 0
    %113 = vmatpush2.bf16.msra.mxu0 0
    %114 = vmatprep.subr.bf16.mxu0 0
    %115 = vmatpush2.bf16.msra.mxu0 0
    %116 = vmatprep.subr.bf16.mxu0 0
    %117 = vmatpush2.bf16.msra.mxu0 0
    %118 = vmatprep.subr.bf16.mxu0 0
    %119 = vmatpush2.bf16.msra.mxu0 0
    %120 = vmatprep.subr.bf16.mxu0 0
    %121 = vmatpush2.bf16.msra.mxu0 0
    %122 = vmatprep.subr.bf16.mxu0 0
    %123 = vmatpush2.bf16.msra.mxu0 0
    %124 = vmatprep.subr.bf16.mxu0 0
    %125 = vmatpush2.bf16.msra.mxu0 0
    %126 = vmatprep.mubr.bf16.mxu0 0
    %127 = vmatmul.mubr.bf16.gmra.mxu0 %v83
    %v128 = vpop.f32.mrf.mxu0
    %v129 = vadd.f32 0.0, %v128
    %v130 = vpop.f32.mrf.mxu0
    %v131 = vpop.f32.mrf.mxu0
    %v132 = vadd.f32 0.0, %v131
    %v133 = vpop.f32.mrf.mxu0
    %134 = vmatprep.mubr.bf16.mxu0 0
    %135 = vmatmul.mubr.bf16.gmra.mxu0 %v86
    %v136 = vpop.f32.mrf.mxu0
    %v137 = vadd.f32 0.0, %v136
    %v138 = vpop.f32.mrf.mxu0
    %v139 = vpop.f32.mrf.mxu0
    %v140 = vadd.f32 0.0, %v139
    %v141 = vpop.f32.mrf.mxu0
    %142 = vmatprep.mubr.bf16.mxu0 0
    %143 = vmatmul.mubr.bf16.gmra.mxu0 %v89
    %v144 = vpop.f32.mrf.mxu0
    %v145 = vadd.f32 0.0, %v144
    %v146 = vpop.f32.mrf.mxu0
    %v147 = vpop.f32.mrf.mxu0
    %v148 = vadd.f32 0.0, %v147
    %v149 = vpop.f32.mrf.mxu0
    %150 = vmatprep.mubr.bf16.mxu0 0
    %151 = vmatmul.mubr.bf16.gmra.mxu0 %v92
    %v152 = vpop.f32.mrf.mxu0
    %v153 = vadd.f32 0.0, %v152
    %v154 = vpop.f32.mrf.mxu0
    %v155 = vpop.f32.mrf.mxu0
    %v156 = vadd.f32 0.0, %v155
    %v157 = vpop.f32.mrf.mxu0
    %158 = vdwg.mxu0
    %vm159 = vcmask 523264
    %v161 = vsel %vm159, %v61, 0
    %v164 = vsel %vm159, %v62, 0
    %v167 = vsel %vm159, %v63, 0
    %v170 = vsel %vm159, %v64, 0
    %172 = vmatprep.subr.bf16.mxu0 0
    %173 = vmatpush1.bf16.msra.mxu0 0
    %174 = vmatprep.subr.bf16.mxu0 0
    %175 = vmatpush1.bf16.msra.mxu0 0
    %176 = vmatprep.subr.bf16.mxu0 0
    %177 = vmatpush1.bf16.msra.mxu0 0
    %178 = vmatprep.subr.bf16.mxu0 0
    %179 = vmatpush1.bf16.msra.mxu0 0
    %180 = vmatprep.subr.bf16.mxu0 0
    %181 = vmatpush1.bf16.msra.mxu0 %v52
    %182 = vmatprep.subr.bf16.mxu0 0
    %183 = vmatpush1.bf16.msra.mxu0 %v51
    %184 = vmatprep.subr.bf16.mxu0 0
    %185 = vmatpush1.bf16.msra.mxu0 %v50
    %186 = vmatprep.subr.bf16.mxu0 0
    %187 = vmatpush1.bf16.msra.mxu0 %v49
    %188 = vmatprep.subr.bf16.mxu0 0
    %189 = vmatpush2.bf16.msra.mxu0 0
    %190 = vmatprep.subr.bf16.mxu0 0
    %191 = vmatpush2.bf16.msra.mxu0 0
    %192 = vmatprep.subr.bf16.mxu0 0
    %193 = vmatpush2.bf16.msra.mxu0 0
    %194 = vmatprep.subr.bf16.mxu0 0
    %195 = vmatpush2.bf16.msra.mxu0 0
    %196 = vmatprep.subr.bf16.mxu0 0
    %197 = vmatpush2.bf16.msra.mxu0 0
    %198 = vmatprep.subr.bf16.mxu0 0
    %199 = vmatpush2.bf16.msra.mxu0 0
    %200 = vmatprep.subr.bf16.mxu0 0
    %201 = vmatpush2.bf16.msra.mxu0 0
    %202 = vmatprep.subr.bf16.mxu0 0
    %203 = vmatpush2.bf16.msra.mxu0 0
    %204 = vmatprep.mubr.bf16.mxu0 0
    %205 = vmatmul.mubr.bf16.gmra.mxu0 %v161
    %v206 = vpop.f32.mrf.mxu0
    %v207 = vadd.f32 0.0, %v206
    %v208 = vpop.f32.mrf.mxu0
    %v209 = vpop.f32.mrf.mxu0
    %v210 = vadd.f32 0.0, %v209
    %v211 = vpop.f32.mrf.mxu0
    %212 = vmatprep.mubr.bf16.mxu0 0
    %213 = vmatmul.mubr.bf16.gmra.mxu0 %v164
    %v214 = vpop.f32.mrf.mxu0
    %v215 = vadd.f32 0.0, %v214
    %v216 = vpop.f32.mrf.mxu0
    %v217 = vpop.f32.mrf.mxu0
    %v218 = vadd.f32 0.0, %v217
    %v219 = vpop.f32.mrf.mxu0
    %220 = vmatprep.mubr.bf16.mxu0 0
    %221 = vmatmul.mubr.bf16.gmra.mxu0 %v167
    %v222 = vpop.f32.mrf.mxu0
    %v223 = vadd.f32 0.0, %v222
    %v224 = vpop.f32.mrf.mxu0
    %v225 = vpop.f32.mrf.mxu0
    %v226 = vadd.f32 0.0, %v225
    %v227 = vpop.f32.mrf.mxu0
    %228 = vmatprep.mubr.bf16.mxu0 0
    %229 = vmatmul.mubr.bf16.gmra.mxu0 %v170
    %v230 = vpop.f32.mrf.mxu0
    %v231 = vadd.f32 0.0, %v230
    %v232 = vpop.f32.mrf.mxu0
    %v233 = vpop.f32.mrf.mxu0
    %v234 = vadd.f32 0.0, %v233
    %v235 = vpop.f32.mrf.mxu0
    %236 = vdwg.mxu0
    %v237 = vpack.c.bf16 %v210, %v207
    %v238 = vpack.c.bf16 %v218, %v215
    %v239 = vpack.c.bf16 %v226, %v223
    %v240 = vpack.c.bf16 %v234, %v231
    %v242 = vlaneseq
    %v243 = vshrl.u32 %v242, 7
    %v244 = vsub.s32 0, %v243
    %v245 = vrot.slane %v67, %v244
    %v249 = vunpack.c.l.b16 %v65
    %v250 = vunpack.c.l.b16 %v66
    %v251 = vpack.c.b16 %v250, %v249
    %v254 = vsel %vm81, %v237, 0
    %v257 = vsel %vm81, %v238, 0
    %v260 = vsel %vm81, %v239, 0
    %v263 = vsel %vm81, %v240, 0
    %265 = vmatprep.subr.bf16.mxu0 0
    %266 = vmatpush1.bf16.msra.mxu0 0
    %267 = vmatprep.subr.bf16.mxu0 0
    %268 = vmatpush1.bf16.msra.mxu0 0
    %269 = vmatprep.subr.bf16.mxu0 0
    %270 = vmatpush1.bf16.msra.mxu0 0
    %271 = vmatprep.subr.bf16.mxu0 0
    %272 = vmatpush1.bf16.msra.mxu0 0
    %273 = vmatprep.subr.bf16.mxu0 0
    %274 = vmatpush1.bf16.msra.mxu0 0
    %275 = vmatprep.subr.bf16.mxu0 0
    %276 = vmatpush1.bf16.msra.mxu0 0
    %277 = vmatprep.subr.bf16.mxu0 0
    %278 = vmatpush1.bf16.msra.mxu0 0
    %279 = vmatprep.subr.bf16.mxu0 0
    %280 = vmatpush1.bf16.msra.mxu0 %v251
    %281 = vmatprep.subr.bf16.mxu0 0
    %282 = vmatpush2.bf16.msra.mxu0 0
    %283 = vmatprep.subr.bf16.mxu0 0
    %284 = vmatpush2.bf16.msra.mxu0 0
    %285 = vmatprep.subr.bf16.mxu0 0
    %286 = vmatpush2.bf16.msra.mxu0 0
    %287 = vmatprep.subr.bf16.mxu0 0
    %288 = vmatpush2.bf16.msra.mxu0 0
    %289 = vmatprep.subr.bf16.mxu0 0
    %290 = vmatpush2.bf16.msra.mxu0 0
    %291 = vmatprep.subr.bf16.mxu0 0
    %292 = vmatpush2.bf16.msra.mxu0 0
    %293 = vmatprep.subr.bf16.mxu0 0
    %294 = vmatpush2.bf16.msra.mxu0 0
    %295 = vmatprep.subr.bf16.mxu0 0
    %296 = vmatpush2.bf16.msra.mxu0 0
    %297 = vmatprep.mubr.bf16.mxu0 0
    %298 = vmatmul.mubr.bf16.gmra.mxu0 %v254
    %v299 = vpop.f32.mrf.mxu0
    %v300 = vadd.f32 %v245, %v299
    %v301 = vpop.f32.mrf.mxu0
    %v302 = vpop.f32.mrf.mxu0
    %v303 = vadd.f32 %v245, %v302
    %v304 = vpop.f32.mrf.mxu0
    %305 = vmatprep.mubr.bf16.mxu0 0
    %306 = vmatmul.mubr.bf16.gmra.mxu0 %v257
    %v307 = vpop.f32.mrf.mxu0
    %v308 = vadd.f32 %v245, %v307
    %v309 = vpop.f32.mrf.mxu0
    %v310 = vpop.f32.mrf.mxu0
    %v311 = vadd.f32 %v245, %v310
    %v312 = vpop.f32.mrf.mxu0
    %313 = vmatprep.mubr.bf16.mxu0 0
    %314 = vmatmul.mubr.bf16.gmra.mxu0 %v260
    %v315 = vpop.f32.mrf.mxu0
    %v316 = vadd.f32 %v245, %v315
    %v317 = vpop.f32.mrf.mxu0
    %v318 = vpop.f32.mrf.mxu0
    %v319 = vadd.f32 %v245, %v318
    %v320 = vpop.f32.mrf.mxu0
    %321 = vmatprep.mubr.bf16.mxu0 0
    %322 = vmatmul.mubr.bf16.gmra.mxu0 %v263
    %v323 = vpop.f32.mrf.mxu0
    %v324 = vadd.f32 %v245, %v323
    %v325 = vpop.f32.mrf.mxu0
    %v326 = vpop.f32.mrf.mxu0
    %v327 = vadd.f32 %v245, %v326
    %v328 = vpop.f32.mrf.mxu0
    %329 = vdwg.mxu0
    %v330 = vmax.f32 %v300, 0.0
    %v331 = vmax.f32 %v303, 0.0
    %v332 = vmax.f32 %v308, 0.0
    %v333 = vmax.f32 %v311, 0.0
    %v334 = vmax.f32 %v316, 0.0
    %v335 = vmax.f32 %v319, 0.0
    %v336 = vmax.f32 %v324, 0.0
    %v337 = vmax.f32 %v327, 0.0
    %v338 = vpack.c.bf16 %v331, %v330
    %v339 = vpack.c.bf16 %v333, %v332
    %v340 = vpack.c.bf16 %v335, %v334
    %v341 = vpack.c.bf16 %v337, %v336
    %v346 = vunpack.c.l.b16 %v68
    %v347 = vunpack.c.l.b16 %v69
    %v348 = vunpack.c.l.b16 %v70
    %v349 = vunpack.c.l.b16 %v71
    %v350 = vpack.c.b16 %v347, %v346
    %v351 = vpack.c.b16 %v349, %v348
    %vm354 = vcmask 261120
    %v356 = vsel %vm354, %v338, 0
    %v359 = vsel %vm354, %v339, 0
    %v362 = vsel %vm354, %v340, 0
    %v365 = vsel %vm354, %v341, 0
    %367 = vmatprep.subr.bf16.mxu0 0
    %368 = vmatpush1.bf16.msra.mxu0 0
    %369 = vmatprep.subr.bf16.mxu0 0
    %370 = vmatpush1.bf16.msra.mxu0 0
    %371 = vmatprep.subr.bf16.mxu0 0
    %372 = vmatpush1.bf16.msra.mxu0 0
    %373 = vmatprep.subr.bf16.mxu0 0
    %374 = vmatpush1.bf16.msra.mxu0 0
    %375 = vmatprep.subr.bf16.mxu0 0
    %376 = vmatpush1.bf16.msra.mxu0 0
    %377 = vmatprep.subr.bf16.mxu0 0
    %378 = vmatpush1.bf16.msra.mxu0 0
    %379 = vmatprep.subr.bf16.mxu0 0
    %380 = vmatpush1.bf16.msra.mxu0 %v351
    %381 = vmatprep.subr.bf16.mxu0 0
    %382 = vmatpush1.bf16.msra.mxu0 %v350
    %383 = vmatprep.subr.bf16.mxu0 0
    %384 = vmatpush2.bf16.msra.mxu0 0
    %385 = vmatprep.subr.bf16.mxu0 0
    %386 = vmatpush2.bf16.msra.mxu0 0
    %387 = vmatprep.subr.bf16.mxu0 0
    %388 = vmatpush2.bf16.msra.mxu0 0
    %389 = vmatprep.subr.bf16.mxu0 0
    %390 = vmatpush2.bf16.msra.mxu0 0
    %391 = vmatprep.subr.bf16.mxu0 0
    %392 = vmatpush2.bf16.msra.mxu0 0
    %393 = vmatprep.subr.bf16.mxu0 0
    %394 = vmatpush2.bf16.msra.mxu0 0
    %395 = vmatprep.subr.bf16.mxu0 0
    %396 = vmatpush2.bf16.msra.mxu0 0
    %397 = vmatprep.subr.bf16.mxu0 0
    %398 = vmatpush2.bf16.msra.mxu0 0
    %399 = vmatprep.mubr.bf16.mxu0 0
    %400 = vmatmul.mubr.bf16.gmra.mxu0 %v356
    %v401 = vpop.f32.mrf.mxu0
    %v402 = vadd.f32 0.0, %v401
    %v403 = vpop.f32.mrf.mxu0
    %v404 = vpop.f32.mrf.mxu0
    %v405 = vadd.f32 0.0, %v404
    %v406 = vpop.f32.mrf.mxu0
    %407 = vmatprep.mubr.bf16.mxu0 0
    %408 = vmatmul.mubr.bf16.gmra.mxu0 %v359
    %v409 = vpop.f32.mrf.mxu0
    %v410 = vadd.f32 0.0, %v409
    %v411 = vpop.f32.mrf.mxu0
    %v412 = vpop.f32.mrf.mxu0
    %v413 = vadd.f32 0.0, %v412
    %v414 = vpop.f32.mrf.mxu0
    %415 = vmatprep.mubr.bf16.mxu0 0
    %416 = vmatmul.mubr.bf16.gmra.mxu0 %v362
    %v417 = vpop.f32.mrf.mxu0
    %v418 = vadd.f32 0.0, %v417
    %v419 = vpop.f32.mrf.mxu0
    %v420 = vpop.f32.mrf.mxu0
    %v421 = vadd.f32 0.0, %v420
    %v422 = vpop.f32.mrf.mxu0
    %423 = vmatprep.mubr.bf16.mxu0 0
    %424 = vmatmul.mubr.bf16.gmra.mxu0 %v365
    %v425 = vpop.f32.mrf.mxu0
    %v426 = vadd.f32 0.0, %v425
    %v427 = vpop.f32.mrf.mxu0
    %v428 = vpop.f32.mrf.mxu0
    %v429 = vadd.f32 0.0, %v428
    %v430 = vpop.f32.mrf.mxu0
    %431 = vdwg.mxu0
    %v432 = vpack.c.bf16 %v405, %v402
    %v433 = vpack.c.bf16 %v413, %v410
    %v434 = vpack.c.bf16 %v421, %v418
    %v435 = vpack.c.bf16 %v429, %v426
    %v437 = vlaneseq
    %v438 = vshrl.u32 %v437, 7
    %v439 = vsub.s32 0, %v438
    %v440 = vrot.slane %v74, %v439
    %442 = vmatprep.subr.bf16.mxu0 0
    %443 = vmatpush1.bf16.msra.mxu0 0
    %444 = vmatprep.subr.bf16.mxu0 0
    %445 = vmatpush1.bf16.msra.mxu0 0
    %446 = vmatprep.subr.bf16.mxu0 0
    %447 = vmatpush1.bf16.msra.mxu0 0
    %448 = vmatprep.subr.bf16.mxu0 0
    %449 = vmatpush1.bf16.msra.mxu0 0
    %450 = vmatprep.subr.bf16.mxu0 0
    %451 = vmatpush1.bf16.msra.mxu0 %v435
    %452 = vmatprep.subr.bf16.mxu0 0
    %453 = vmatpush1.bf16.msra.mxu0 %v434
    %454 = vmatprep.subr.bf16.mxu0 0
    %455 = vmatpush1.bf16.msra.mxu0 %v433
    %456 = vmatprep.subr.bf16.mxu0 0
    %457 = vmatpush1.bf16.msra.mxu0 %v432
    %458 = vmatprep.subr.bf16.mxu0 0
    %459 = vmatpush2.bf16.msra.mxu0 0
    %460 = vmatprep.subr.bf16.mxu0 0
    %461 = vmatpush2.bf16.msra.mxu0 0
    %462 = vmatprep.subr.bf16.mxu0 0
    %463 = vmatpush2.bf16.msra.mxu0 0
    %464 = vmatprep.subr.bf16.mxu0 0
    %465 = vmatpush2.bf16.msra.mxu0 0
    %466 = vmatprep.subr.bf16.mxu0 0
    %467 = vmatpush2.bf16.msra.mxu0 0
    %468 = vmatprep.subr.bf16.mxu0 0
    %469 = vmatpush2.bf16.msra.mxu0 0
    %470 = vmatprep.subr.bf16.mxu0 0
    %471 = vmatpush2.bf16.msra.mxu0 0
    %472 = vmatprep.subr.bf16.mxu0 0
    %473 = vmatpush2.bf16.msra.mxu0 0
    %474 = vmatprep.mubr.bf16.mxu0 0
    %475 = vmatmul.mubr.bf16.gmra.mxu0 %v161
    %v476 = vpop.f32.mrf.mxu0
    %v477 = vadd.f32 %v440, %v476
    %v478 = vpop.f32.mrf.mxu0
    %v479 = vpop.f32.mrf.mxu0
    %v480 = vadd.f32 %v440, %v479
    %v481 = vpop.f32.mrf.mxu0
    %482 = vmatprep.mubr.bf16.mxu0 0
    %483 = vmatmul.mubr.bf16.gmra.mxu0 %v164
    %v484 = vpop.f32.mrf.mxu0
    %v485 = vadd.f32 %v440, %v484
    %v486 = vpop.f32.mrf.mxu0
    %v487 = vpop.f32.mrf.mxu0
    %v488 = vadd.f32 %v440, %v487
    %v489 = vpop.f32.mrf.mxu0
    %490 = vmatprep.mubr.bf16.mxu0 0
    %491 = vmatmul.mubr.bf16.gmra.mxu0 %v167
    %v492 = vpop.f32.mrf.mxu0
    %v493 = vadd.f32 %v440, %v492
    %v494 = vpop.f32.mrf.mxu0
    %v495 = vpop.f32.mrf.mxu0
    %v496 = vadd.f32 %v440, %v495
    %v497 = vpop.f32.mrf.mxu0
    %498 = vmatprep.mubr.bf16.mxu0 0
    %499 = vmatmul.mubr.bf16.gmra.mxu0 %v170
    %v500 = vpop.f32.mrf.mxu0
    %v501 = vadd.f32 %v440, %v500
    %v502 = vpop.f32.mrf.mxu0
    %v503 = vpop.f32.mrf.mxu0
    %v504 = vadd.f32 %v440, %v503
    %v505 = vpop.f32.mrf.mxu0
    %506 = vdwg.mxu0
    %v507 = vadd.f32 %v477, %v129
    %v508 = vadd.f32 %v480, %v132
    %v509 = vadd.f32 %v485, %v137
    %v510 = vadd.f32 %v488, %v140
    %v511 = vadd.f32 %v493, %v145
    %v512 = vadd.f32 %v496, %v148
    %v513 = vadd.f32 %v501, %v153
    %v514 = vadd.f32 %v504, %v156
    %v515 = vmax.f32 %v507, 0.0
    %v516 = vmax.f32 %v508, 0.0
    %v517 = vmax.f32 %v509, 0.0
    %v518 = vmax.f32 %v510, 0.0
    %v519 = vmax.f32 %v511, 0.0
    %v520 = vmax.f32 %v512, 0.0
    %v521 = vmax.f32 %v513, 0.0
    %v522 = vmax.f32 %v514, 0.0
    %v523 = vlaneseq
    %v524 = vand.u32 %v523, 127
    %vm525 = vcmp.lt.s32.totalorder %v524, 8
    %v526 = vsel %vm525, %v515, -1e+30
    %v527 = vsel %vm525, %v516, -1e+30
    %v528 = vsel %vm525, %v517, -1e+30
    %v529 = vsel %vm525, %v518, -1e+30
    %v530 = vsel %vm525, %v519, -1e+30
    %v531 = vsel %vm525, %v520, -1e+30
    %v532 = vsel %vm525, %v521, -1e+30
    %v533 = vsel %vm525, %v522, -1e+30
    %534 = vmax.xlane.f32.xlu0 %v526
    %v535 = vpop.xlane.xlu0 %534
    %536 = vmax.xlane.f32.xlu0 %v527
    %v537 = vpop.xlane.xlu0 %536
    %538 = vmax.xlane.f32.xlu0 %v528
    %v539 = vpop.xlane.xlu0 %538
    %540 = vmax.xlane.f32.xlu0 %v529
    %v541 = vpop.xlane.xlu0 %540
    %542 = vmax.xlane.f32.xlu0 %v530
    %v543 = vpop.xlane.xlu0 %542
    %544 = vmax.xlane.f32.xlu0 %v531
    %v545 = vpop.xlane.xlu0 %544
    %546 = vmax.xlane.f32.xlu0 %v532
    %v547 = vpop.xlane.xlu0 %546
    %548 = vmax.xlane.f32.xlu0 %v533
    %v549 = vpop.xlane.xlu0 %548
    %v550 = vsub.f32 %v526, %v535
    %v551 = vsub.f32 %v527, %v537
    %v552 = vsub.f32 %v528, %v539
    %v553 = vsub.f32 %v529, %v541
    %v554 = vsub.f32 %v530, %v543
    %v555 = vsub.f32 %v531, %v545
    %v556 = vsub.f32 %v532, %v547
    %v557 = vsub.f32 %v533, %v549
    %v558 = vmul.f32 %v550, 1.442695
    %v559 = vpow.pop %v558
    %v560 = vmul.f32 %v551, 1.442695
    %v561 = vpow.pop %v560
    %v562 = vmul.f32 %v552, 1.442695
    %v563 = vpow.pop %v562
    %v564 = vmul.f32 %v553, 1.442695
    %v565 = vpow.pop %v564
    %v566 = vmul.f32 %v554, 1.442695
    %v567 = vpow.pop %v566
    %v568 = vmul.f32 %v555, 1.442695
    %v569 = vpow.pop %v568
    %v570 = vmul.f32 %v556, 1.442695
    %v571 = vpow.pop %v570
    %v572 = vmul.f32 %v557, 1.442695
    %v573 = vpow.pop %v572
    %574 = vadd.xlane.f32.xlu0 %v559
    %v575 = vpop.xlane.xlu0 %574
    %576 = vadd.xlane.f32.xlu0 %v561
    %v577 = vpop.xlane.xlu0 %576
    %578 = vadd.xlane.f32.xlu0 %v563
    %v579 = vpop.xlane.xlu0 %578
    %580 = vadd.xlane.f32.xlu0 %v565
    %v581 = vpop.xlane.xlu0 %580
    %582 = vadd.xlane.f32.xlu0 %v567
    %v583 = vpop.xlane.xlu0 %582
    %584 = vadd.xlane.f32.xlu0 %v569
    %v585 = vpop.xlane.xlu0 %584
    %586 = vadd.xlane.f32.xlu0 %v571
    %v587 = vpop.xlane.xlu0 %586
    %588 = vadd.xlane.f32.xlu0 %v573
    %v589 = vpop.xlane.xlu0 %588
    %v590 = vlog2.pop %v575
    %v591 = vmul.f32 %v590, 0.6931472
    %v592 = vlog2.pop %v577
    %v593 = vmul.f32 %v592, 0.6931472
    %v594 = vlog2.pop %v579
    %v595 = vmul.f32 %v594, 0.6931472
    %v596 = vlog2.pop %v581
    %v597 = vmul.f32 %v596, 0.6931472
    %v598 = vlog2.pop %v583
    %v599 = vmul.f32 %v598, 0.6931472
    %v600 = vlog2.pop %v585
    %v601 = vmul.f32 %v600, 0.6931472
    %v602 = vlog2.pop %v587
    %v603 = vmul.f32 %v602, 0.6931472
    %v604 = vlog2.pop %v589
    %v605 = vmul.f32 %v604, 0.6931472
    %v606 = vsub.f32 %v550, %v591
    %v607 = vsub.f32 %v551, %v593
    %v608 = vsub.f32 %v552, %v595
    %v609 = vsub.f32 %v553, %v597
    %v610 = vsub.f32 %v554, %v599
    %v611 = vsub.f32 %v555, %v601
    %v612 = vsub.f32 %v556, %v603
    %v613 = vsub.f32 %v557, %v605
    %614 = vst [vmem:[%s7] sm:$0xff] %v606
    %615 = vst [vmem:[%s7 + $0x8] sm:$0xff] %v607
    %616 = vst [vmem:[%s7 + $0x10] sm:$0xff] %v608
    %617 = vst [vmem:[%s7 + $0x18] sm:$0xff] %v609
    %618 = vst [vmem:[%s7 + $0x20] sm:$0xff] %v610
    %619 = vst [vmem:[%s7 + $0x28] sm:$0xff] %v611
    %620 = vst [vmem:[%s7 + $0x30] sm:$0xff] %v612
    %621 = vst [vmem:[%s7 + $0x38] sm:$0xff] %v613
    // Predicated region
    $region34: #{gcn_forward.1} parent=1 // pred_check
      _
    $region35: #{gcn_forward.1} parent=1 // pred_check_branch
      %623 = sbr.rel (0) target = $region37
    $region36: #{gcn_forward.1} parent=1 // pred_region
      _
    $region37: #{gcn_forward.1} parent=1 // pred_fallthru
      _
    // Predicated region
    $region38: #{gcn_forward.1} parent=1 // pred_check
      _
    $region39: #{gcn_forward.1} parent=1 // pred_check_branch
      %625 = sbr.rel (0) target = $region41
    $region40: #{gcn_forward.1} parent=1 // pred_region
      _
    $region41: #{gcn_forward.1} parent=1 // pred_fallthru
      _
    %626 = vsyncpa [#allocation3], 1

</llo_original>
